<compile_context>
chip_gen: v7x
topology: tpu7x:2x2x1
jax: 0.10.0
libtpu: 0.0.40
codegen_flags: <defaults>
</compile_context>

<pallas_src>
import functools

import jax
import jax.numpy as jnp
from jax import lax
from jax.experimental import pallas as pl
from jax.experimental.pallas import tpu as pltpu

BN_EPS = 1e-5
LEAKY_SLOPE = 0.1
LANE = 128


def _round_up(x, m):
    return (x + m - 1) // m * m


@functools.lru_cache(maxsize=None)
def _roll_is_numpy_convention():
    """pltpu.roll follows jnp.roll semantics (out[i] = in[i - shift]).  Probe it
    once at runtime so a convention change across JAX versions can never
    silently flip the convolution shifts."""
    def k(x_ref, o_ref):
        o_ref[...] = pltpu.roll(x_ref[...], 1, 1)

    x = jnp.arange(8 * 128, dtype=jnp.float32).reshape(8, 128)
    y = pl.pallas_call(k, out_shape=jax.ShapeDtypeStruct((8, 128), jnp.float32))(x)
    return bool(y[0, 0] == 127.0)


# ---------------------------------------------------------------------------
# Pallas kernels
# ---------------------------------------------------------------------------
def _stats_kernel(x_ref, sum_ref, sq_ref):
    """Per-channel sum and sum-of-squares over a block of depth planes.

    Halo / pad lanes are exact zeros, so they contribute nothing to either
    accumulator and no masking is needed.
    """
    @pl.when(pl.program_id(1) == 0)
    def _():
        sum_ref[...] = jnp.zeros_like(sum_ref)
        sq_ref[...] = jnp.zeros_like(sq_ref)

    x = x_ref[...].astype(jnp.float32)                      # (blk, C, P)
    sum_ref[...] += jnp.sum(jnp.sum(x, axis=2, keepdims=True), axis=0)
    sq_ref[...] += jnp.sum(jnp.sum(x * x, axis=2, keepdims=True), axis=0)


def _conv_bn_kernel(x_ref, scale_ref, shift_ref, mask_ref, w_ref, b_ref,
                    o_ref, win_ref, *, wp, depth, np_roll):
    """One grid step = one 'virtual' depth step t in [0, D].

    VMEM scratch `win_ref` holds a sliding window of three BN-normalized,
    halo-masked depth planes (bf16), laid out as rows
        [0:C)   = plane t-2   (conv tap kd=0)
        [C:2C)  = plane t-1   (conv tap kd=1)
        [2C:3C) = plane t     (conv tap kd=2)
    Step t emits output depth plane d = t-1 (nothing at t == 0).  Out-of-range
    depth neighbours are zero planes in the window, so no validity multiplies
    are needed.
    """
    t = pl.program_id(1)
    cin = scale_ref.shape[0]
    p_len = mask_ref.shape[1]

    # 1) Slide the window down one depth plane (rows [C:3C) -> rows [0:2C)).
    @pl.when(t > 0)
    def _():
        mid = win_ref[pl.ds(cin, cin), :]
        top = win_ref[pl.ds(2 * cin, cin), :]
        win_ref[pl.ds(0, cin), :] = mid
        win_ref[pl.ds(cin, cin), :] = top

    # 2) Start of a new batch item: "plane -1" slot is all zeros.
    @pl.when(t == 0)
    def _():
        win_ref[pl.ds(cin, cin), :] = jnp.zeros((cin, p_len), win_ref.dtype)

    # 3) Normalize the incoming plane exactly once (BN affine + halo mask) and
    #    push it into the top of the window, in bf16 for the MXU.
    @pl.when(t < depth)
    def _():
        yn = (x_ref[...].astype(jnp.float32) * scale_ref[...]
              + shift_ref[...]) * mask_ref[...]
        win_ref[pl.ds(2 * cin, cin), :] = yn.astype(win_ref.dtype)

    @pl.when(t == depth)        # virtual plane D is all zeros
    def _():
        win_ref[pl.ds(2 * cin, cin), :] = jnp.zeros((cin, p_len), win_ref.dtype)

    # 4) Implicit-GEMM conv: 9 bf16 MXU matmuls with K = 3*Cin; the (kh, kw)
    #    lane shift is applied to the f32 matmul result with an XLU roll.
    @pl.when(t > 0)
    def _():
        stacked = win_ref[...]                               # (3*Cin, P) bf16
        cout = o_ref.shape[0]
        acc = jnp.zeros((cout, p_len), jnp.float32)
        # TODO(synk): for very large planes (Cout*P*4 >> vreg file) chunk the
        # lane dimension here to bound accumulator/spill pressure.
        for kh in range(3):
            for kw in range(3):
                s = (kh - 1) * wp + (kw - 1)
                part = jnp.dot(w_ref[kh * 3 + kw], stacked,
                               preferred_element_type=jnp.float32)
                if s != 0:
                    sh = (-s) % p_len if np_roll else s % p_len
                    part = pltpu.roll(part, sh, 1)
                acc = acc + part
        acc = acc + b_ref[...]
        acc = jnp.where(acc >= 0.0, acc, LEAKY_SLOPE * acc)
        # Re-zero halo lanes (this also kills any roll-wrapped junk, which by
        # construction only lands on halo/pad lanes).
        o_ref[...] = (acc * mask_ref[...]).astype(o_ref.dtype)


# ---------------------------------------------------------------------------
# pallas_call wrappers
# ---------------------------------------------------------------------------
def channel_stats_pallas(a, count):
    """Per-channel (mean, biased var) over the valid voxels of a plane-layout
    activation (N, D, C, P) with zero halos.  Returns two (C, 1) f32 arrays."""
    N, D, C, P = a.shape
    nd = N * D
    groups = 2 if nd % 2 == 0 else 1           # let both TCs work (v7x)
    per = nd // groups
    blk = 1
    for cand in range(min(8, per), 0, -1):     # several planes per grid step
        if per % cand == 0:
            blk = cand
            break
    steps = per // blk
    a_r = a.reshape(groups, per, C, P)

    plane_spec = pl.BlockSpec((None, blk, C, P), lambda i, j: (i, j, 0, 0))
    acc_spec = pl.BlockSpec((None, C, 1), lambda i, j: (i, 0, 0))

    sums, sqs = pl.pallas_call(
        _stats_kernel,
        out_shape=(jax.ShapeDtypeStruct((groups, C, 1), jnp.float32),
                   jax.ShapeDtypeStruct((groups, C, 1), jnp.float32)),
        grid_spec=pltpu.PrefetchScalarGridSpec(
            num_scalar_prefetch=0, grid=(groups, steps),
            in_specs=[plane_spec], out_specs=[acc_spec, acc_spec]),
        compiler_params=pltpu.CompilerParams(
            dimension_semantics=("parallel", "arbitrary")),
    )(a_r)

    mean = jnp.sum(sums, axis=0) / count                      # (C, 1)
    var = jnp.sum(sqs, axis=0) / count - mean * mean
    return mean, jnp.maximum(var, 0.0)


def conv_bn_leakyrelu_pallas(a, mask, scale, shift, w, b, wp, out_dtype):
    """Fused BN-affine + Conv3d(3, pad=1) + bias + LeakyReLU in plane layout.

    a: (N, D, Cin, P) with zero halos -> (N, D, Cout, P) with zero halos.
    """
    N, D, Cin, P = a.shape
    Cout = w.shape[0]

    # (Cout, Cin, kd, kh, kw) -> (kh*3+kw, Cout, kd*Cin + cin); bf16 for MXU.
    w9 = jnp.transpose(w, (3, 4, 0, 2, 1)).reshape(9, Cout, 3 * Cin)
    w9 = w9.astype(jnp.bfloat16)
    b2 = b.reshape(Cout, 1).astype(jnp.float32)

    kernel = functools.partial(_conv_bn_kernel, wp=wp, depth=D,
                               np_roll=_roll_is_numpy_convention())

    const2 = lambda n, t: (0, 0)

    in_bytes = a.dtype.itemsize
    out_bytes = 2 if out_dtype == jnp.bfloat16 else 4
    est = (2 * Cin * P * in_bytes            # double-buffered input plane
           + 2 * Cout * P * out_bytes        # double-buffered output plane
           + 3 * Cin * P * 2                 # sliding window (bf16)
           + 9 * Cout * 3 * Cin * 2          # weights
           + 2 * Cout * P * 4                # acc + rolled partial (f32)
           + 2 * Cin * P * 4)                # normalization temps
    vmem_limit = int(min(max(32 * 1024 * 1024, 2 * est), 64 * 1024 * 1024))

    return pl.pallas_call(
        kernel,
        out_shape=jax.ShapeDtypeStruct((N, D, Cout, P), out_dtype),
        grid_spec=pltpu.PrefetchScalarGridSpec(
            num_scalar_prefetch=0,
            grid=(N, D + 1),
            in_specs=[
                pl.BlockSpec((None, None, Cin, P),
                             lambda n, t: (n, jnp.minimum(t, D - 1), 0, 0)),
                pl.BlockSpec((Cin, 1), const2),
                pl.BlockSpec((Cin, 1), const2),
                pl.BlockSpec((1, P), const2),
                pl.BlockSpec((9, Cout, 3 * Cin), lambda n, t: (0, 0, 0)),
                pl.BlockSpec((Cout, 1), const2),
            ],
            out_specs=pl.BlockSpec((None, None, Cout, P),
                                   lambda n, t: (n, jnp.maximum(t - 1, 0), 0, 0)),
            scratch_shapes=[pltpu.VMEM((3 * Cin, P), jnp.bfloat16)],
        ),
        compiler_params=pltpu.CompilerParams(
            dimension_semantics=("parallel", "arbitrary"),
            vmem_limit_bytes=vmem_limit),
    )(a, scale, shift, mask, w9, b2)


# ---------------------------------------------------------------------------
# Layout glue (boundary only) + module assembly
# ---------------------------------------------------------------------------
def _plane_dims(H, W):
    Hp, Wp = H + 2, W + 2
    P = max(_round_up(Hp * Wp, LANE), LANE)
    return Hp, Wp, P


def to_plane_layout(x_ncdhw, P):
    """(N, C, D, H, W) -> (N, D, C, P), spatial halo + lane pad = 0."""
    N, C, D, H, W = x_ncdhw.shape
    Hp, Wp = H + 2, W + 2
    xt = jnp.transpose(x_ncdhw, (0, 2, 1, 3, 4))          # (N, D, C, H, W)
    xt = jnp.pad(xt, ((0, 0), (0, 0), (0, 0), (1, 1), (1, 1)))
    xt = xt.reshape(N, D, C, Hp * Wp)
    if P > Hp * Wp:
        xt = jnp.pad(xt, ((0, 0), (0, 0), (0, 0), (0, P - Hp * Wp)))
    return xt.astype(jnp.float32)


def from_plane_layout(a, H, W):
    """(N, D, C, P) -> (N, C, D, H, W)."""
    N, D, C, _ = a.shape
    Hp, Wp = H + 2, W + 2
    v = a[..., :Hp * Wp].reshape(N, D, C, Hp, Wp)[:, :, :, 1:H + 1, 1:W + 1]
    return jnp.transpose(v, (0, 2, 1, 3, 4))


def make_valid_mask(H, W, P):
    Hp, Wp = H + 2, W + 2
    m = jnp.zeros((Hp, Wp), jnp.float32).at[1:H + 1, 1:W + 1].set(1.0)
    m = m.reshape(1, Hp * Wp)
    if P > Hp * Wp:
        m = jnp.pad(m, ((0, 0), (0, P - Hp * Wp)))
    return m


def nearest_interp_3d(x, size):
    """F.interpolate(x, size) with default mode='nearest' for NCDHW input."""
    _, _, Din, Hin, Win = x.shape
    Dout, Hout, Wout = size
    di = (jnp.arange(Dout) * Din // Dout).astype(jnp.int32)
    hi = (jnp.arange(Hout) * Hin // Hout).astype(jnp.int32)
    wi = (jnp.arange(Wout) * Win // Wout).astype(jnp.int32)
    return x[:, :, di][:, :, :, hi][:, :, :, :, wi]


def single_conv(a, params, mask, count, wp, out_dtype):
    """BatchNorm3d (batch stats) + Conv3d(3, pad=1) + LeakyReLU(0.1), fused."""
    mean, var = channel_stats_pallas(a, count)
    scale = params["gamma"].reshape(-1, 1) * lax.rsqrt(var + BN_EPS)
    shift = params["beta"].reshape(-1, 1) - mean * scale
    return conv_bn_leakyrelu_pallas(a, mask, scale, shift,
                                    params["w"], params["b"], wp, out_dtype)


def decoder_forward(params, encoder_features, x):
    """Decoder.forward: interpolate -> concat(channel) -> DoubleConv(encoder=False)."""
    N, _, D, H, W = encoder_features.shape
    x_up = nearest_interp_3d(x, (D, H, W))
    xin = jnp.concatenate((encoder_features, x_up), axis=1)   # (N, Cin, D, H, W)

    # TODO(synk): fold the NCDHW -> plane-layout relayout into the first stats
    # kernel to save one boundary HBM round trip.
    _, _, P = _plane_dims(H, W)
    a = to_plane_layout(xin, P)                               # (N, D, Cin, P) f32
    mask = make_valid_mask(H, W, P)                           # (1, P)
    count = N * D * H * W
    wp = W + 2

    a = single_conv(a, params["sc1"], mask, count, wp, out_dtype=jnp.bfloat16)
    a = single_conv(a, params["sc2"], mask, count, wp, out_dtype=jnp.float32)
    return from_plane_layout(a, H, W)                         # (N, Cout, D, H, W)


# ---------------------------------------------------------------------------
# Parameter init + pure-JAX reference (for sanity checking)
# ---------------------------------------------------------------------------
def init_params(key, in_channels, out_channels):
    # DoubleConv(encoder=False): SingleConv1: in->out, SingleConv2: out->out.
    ks = jax.random.split(key, 8)

    def sc(kw, kb, kg, kbe, cin, cout):
        return {
            "w": 0.1 * jax.random.normal(kw, (cout, cin, 3, 3, 3), jnp.float32),
            "b": 0.1 * jax.random.normal(kb, (cout,), jnp.float32),
            "gamma": 1.0 + 0.1 * jax.random.normal(kg, (cin,), jnp.float32),
            "beta": 0.1 * jax.random.normal(kbe, (cin,), jnp.float32),
        }

    return {
        "sc1": sc(ks[0], ks[1], ks[2], ks[3], in_channels, out_channels),
        "sc2": sc(ks[4], ks[5], ks[6], ks[7], out_channels, out_channels),
    }


def _single_conv_ref(x, p):
    mean = jnp.mean(x, axis=(0, 2, 3, 4), keepdims=True)
    var = jnp.mean((x - mean) ** 2, axis=(0, 2, 3, 4), keepdims=True)
    xn = (x - mean) * lax.rsqrt(var + BN_EPS)
    xn = xn * p["gamma"].reshape(1, -1, 1, 1, 1) + p["beta"].reshape(1, -1, 1, 1, 1)
    y = lax.conv_general_dilated(
        xn, p["w"], window_strides=(1, 1, 1), padding="SAME",
        dimension_numbers=("NCDHW", "OIDHW", "NCDHW"))
    y = y + p["b"].reshape(1, -1, 1, 1, 1)
    return jnp.where(y >= 0, y, LEAKY_SLOPE * y)


def decoder_ref(params, encoder_features, x):
    x = nearest_interp_3d(x, encoder_features.shape[2:])
    x = jnp.concatenate((encoder_features, x), axis=1)
    x = _single_conv_ref(x, params["sc1"])
    x = _single_conv_ref(x, params["sc2"])
    return x


# ---------------------------------------------------------------------------
if __name__ == "__main__":
    key = jax.random.PRNGKey(0)
    k_enc, k_x, k_p = jax.random.split(key, 3)

    # Small shapes: encoder skip at 8^3, decoder input at 4^3 (upsampled 2x).
    N, C_enc, C_x = 2, 4, 4
    D = H = W = 8
    encoder_features = jax.random.normal(k_enc, (N, C_enc, D, H, W), jnp.float32)
    x = jax.random.normal(k_x, (N, C_x, D // 2, H // 2, W // 2), jnp.float32)

    in_channels = C_enc + C_x   # channels after concat
    out_channels = 8
    params = init_params(k_p, in_channels, out_channels)

    _roll_is_numpy_convention()          # prime the roll-convention probe

    out = jax.jit(decoder_forward)(params, encoder_features, x)
    out = jax.block_until_ready(out)
    assert out.shape == (N, out_channels, D, H, W), out.shape

    ref = decoder_ref(params, encoder_features, x)
    # bf16 MXU operands + bf16 inter-conv activation => looser parity than f32.
    assert jnp.allclose(out, ref, rtol=5e-2, atol=5e-2), float(jnp.abs(out - ref).max())

    print("KERNEL_OK")
</pallas_src>

<mosaic_0001>
module attributes {stable_mosaic.version = 11 : i64} {
  func.func @k(%arg0: memref<8x128xf32, #tpu.memory_space<vmem>>, %arg1: memref<8x128xf32, #tpu.memory_space<vmem>>) attributes {dimension_semantics = [], scalar_prefetch = 0 : i64, scratch_operands = 0 : i64, tpu.core_type = #tpu.core_type<tc>} {
    %c0 = arith.constant 0 : index
    %c0_0 = arith.constant 0 : index
    %0 = vector.load %arg0[%c0, %c0_0] : memref<8x128xf32, #tpu.memory_space<vmem>>, vector<8x128xf32>
    %c1_i32 = arith.constant 1 : i32
    %1 = tpu.dynamic_rotate %0 by %c1_i32 dim 1 : vector<8x128xf32>, i32 -> vector<8x128xf32>
    %c0_1 = arith.constant 0 : index
    %c0_2 = arith.constant 0 : index
    %2 = vector.load %arg1[%c0_1, %c0_2] : memref<8x128xf32, #tpu.memory_space<vmem>>, vector<8x128xf32>
    tpu.vector_store %arg1[%c0_1, %c0_2], %1 {strides = array<i32>} : memref<8x128xf32, #tpu.memory_space<vmem>>, vector<8x128xf32>,
    return
  }
}

</mosaic_0001>

<llo_original>
// kernel: tpu_custom_call.1
$region0: #{tpu_custom_call.1}
  #allocation0 [shape = 'u32[]', space=smem, size = 0x4, offset = 0x4, fixed_abs, tag = 'smem constant byte address 0x4 - core index']
  #allocation1 [shape = 'u32[144,128]{1,0:T(1,128)}', space=vmem, size = 0x12000, scoped, tag = 'internal scratch']
  %s0 = inlined_call_operand.hbm [shape: f32[8,128], index: 0, kind: input, shape index: {}]
  %s1 = inlined_call_operand.hbm [shape: f32[8,128], index: 1, kind: output, shape index: {}]
  %s2 = sld [smem:[#allocation0]]
  $region18: #{tpu_custom_call.1} parent=0
    _
  %s4 = ssub.s32 1, %s2
  %s5 = scalar_select 0, %s4, %s2
  $region1: #{tpu_custom_call.1} parent=0
    #allocation2 [shape = 'u8[4096]{0}', space=vmem, size = 0x1000, scoped, tag = 'input window, operand 0, single buffered']
    #allocation3 [shape = 's32[1]{0}', space=sflag, size = 0x4, scoped, tag = 'scoped memory for tpu_custom_call.1']
    #allocation4 [shape = 's32[1]{0}', space=sflag, size = 0x4, scoped, tag = 'scoped memory for tpu_custom_call.1']
    #allocation5 [shape = 'u8[4096]{0}', space=vmem, size = 0x1000, scoped, tag = 'output window, operand 0, single buffered']
    %6 = vsyncpa [#allocation3], 0
    %7 = vsyncpa [#allocation4], 0
    // Predicated region
    $region2: #{tpu_custom_call.1} parent=1 // pred_check
      _
    $region3: #{tpu_custom_call.1} parent=1 // pred_check_branch
      %9 = sbr.rel (0) target = $region5
    $region4: #{tpu_custom_call.1} parent=1 // pred_region
      %s11 = ssub.s32 128, 128
      %12 = vsyncadd [#allocation3], %s11
      %s14 = sshll.u32 [#allocation2], 4
      %s15 = int_to_ptr.vmem [resolvable:$true] %s14
      %17 = dma.hbm_to_vmem [thread:$0]  %s0, 128, %s15, [#allocation3]
    $region5: #{tpu_custom_call.1} parent=1 // pred_fallthru
      _
    // Predicated region
    $region6: #{tpu_custom_call.1} parent=1 // pred_check
      _
    $region7: #{tpu_custom_call.1} parent=1 // pred_check_branch
      %19 = sbr.rel (0) target = $region9
    $region8: #{tpu_custom_call.1} parent=1 // pred_region
      %20 = dma.done [#allocation3], 128
    $region9: #{tpu_custom_call.1} parent=1 // pred_fallthru
      _
    %v21 = vld [vmem:[#allocation2] sm:$0xff]
    %22 = vrot.lane.b32.xlu0 %v21, 1
    %v23 = vpop.permute.xlu0 %22
    %24 = vst [vmem:[#allocation5] sm:$0xff] %v23
    // Predicated region
    $region10: #{tpu_custom_call.1} parent=1 // pred_check
      _
    $region11: #{tpu_custom_call.1} parent=1 // pred_check_branch
      %26 = sbr.rel (0) target = $region13
    $region12: #{tpu_custom_call.1} parent=1 // pred_region
      %s28 = ssub.s32 128, 128
      %29 = vsyncadd [#allocation4], %s28
      %s31 = sshll.u32 [#allocation5], 4
      %s32 = int_to_ptr.vmem [resolvable:$true] %s31
      %34 = dma.vmem_to_hbm [thread:$0]  %s32, 128, %s1, [#allocation4]
    $region13: #{tpu_custom_call.1} parent=1 // pred_fallthru
      _
    // Predicated region
    $region14: #{tpu_custom_call.1} parent=1 // pred_check
      _
    $region15: #{tpu_custom_call.1} parent=1 // pred_check_branch
      %36 = sbr.rel (0) target = $region17
    $region16: #{tpu_custom_call.1} parent=1 // pred_region
      %37 = dma.done [#allocation4], 128
    $region17: #{tpu_custom_call.1} parent=1 // pred_fallthru
      _
    %38 = vsyncpa [#allocation3], 1
    %39 = vsyncpa [#allocation4], 1

</llo_original>
